<compile_context>
chip_gen: v7x
topology: tpu7x:2x2x1
jax: 0.10.0
libtpu: 0.0.40
codegen_flags: <defaults>
</compile_context>

<pallas_src>
import functools

import jax
import jax.numpy as jnp
from jax.experimental import pallas as pl
from jax.experimental.pallas import tpu as pltpu

LN_EPS = 1e-5
L2_EPS = 1e-12          # torch.nn.functional.normalize default eps
_SUBLANE = 8            # f32 sublane granularity for the batch tile
_LANE = 128             # lane width; pad A / H to multiples of this


def _round_up(n, m):
    return (n + m - 1) // m * m


@functools.lru_cache(maxsize=None)
def _tpu_config():
    """Generation-aware VMEM budget / tile caps (conservative fallback)."""
    vmem_cap = None
    try:
        info = pltpu.get_tpu_info()
        vmem_cap = getattr(info, "vmem_capacity_bytes", None)
    except Exception:
        vmem_cap = None
    if vmem_cap is None:
        # Unknown chip: conservative settings that fit every generation.
        return {"vmem_limit": 48 << 20, "two_cores": False, "tb_cap": 256}
    if vmem_cap <= (80 << 20):
        # v7x: 64 MiB VMEM per TensorCore, 2 TCs -> keep headroom, feed both cores.
        return {"vmem_limit": 56 << 20, "two_cores": True, "tb_cap": 512}
    # v5e / v6e: 128 MiB VMEM, single TensorCore -> big tiles, big scoped limit.
    return {"vmem_limit": 96 << 20, "two_cores": False, "tb_cap": 1024}


def _rel_transformer_block_kernel(
    x_ref,      # (TB, D)        batch tile of inputs, native dtype (f32)
    anchT_ref,  # (D, A_pad)     pre-normalized anchors^T, zero-padded, bf16
    w1_ref,     # (A_pad, H_pad) gamma-folded FFN weight, zero-padded, bf16
    b1_ref,     # (1, H_pad)     beta-folded FFN bias, f32
    w2_ref,     # (H_pad, A_pad) FFN second linear weight, zero-padded, bf16
    b2_ref,     # (1, A_pad)     f32
    out_ref,    # (TB, A_pad)    AttentionOutput.OUTPUT, f32
    sims_ref,   # (TB, A_pad)    AttentionOutput.SIMILARITIES / UNTRASFORMED_ATTENDED
    *,
    num_anchors,  # true A (un-padded) for the LayerNorm statistics
    n_sub,        # number of independent sub-tile chains
    sub_tb,       # rows per sub-tile (multiple of 8)
):
    inv_a = jnp.float32(1.0 / num_anchors)
    b1 = b1_ref[...]
    b2 = b2_ref[...]

    # Independent sub-tile chains (static starts -> static, aligned slices): lets
    # the scheduler overlap one sub-tile's MXU matmuls with the neighbor's
    # VPU/XLU LayerNorm reductions and EUP sigmoid, and bounds the live range of
    # the (sub_tb x H_pad) f32 temporaries.
    for s in range(n_sub):
        rows = pl.ds(s * sub_tb, sub_tb)

        x = x_ref[rows, :].astype(jnp.float32)
        # F.normalize semantics: x / max(||x||, eps); rsqrt(max(sumsq, eps^2)) is
        # one EUP op, no divide, computed in f32.
        sumsq = jnp.sum(x * x, axis=-1, keepdims=True)
        x_n = x * jax.lax.rsqrt(jnp.maximum(sumsq, L2_EPS * L2_EPS))

        # bf16 MXU operands, f32 accumulation. Padded anchor columns are exactly
        # zero, so padded sim lanes are exactly zero.
        sims = jnp.dot(x_n.astype(jnp.bfloat16), anchT_ref[...],
                       preferred_element_type=jnp.float32)   # (sub_tb, A_pad)
        sims_ref[rows, :] = sims

        # LayerNorm statistics over the TRUE A lanes only: padded sims are exactly
        # 0, so plain sums over the padded width divided by num_anchors are exact;
        # variance via E[x^2] - mean^2 avoids needing a lane mask.
        mean = jnp.sum(sims, axis=-1, keepdims=True) * inv_a
        e_x2 = jnp.sum(sims * sims, axis=-1, keepdims=True) * inv_a
        var = e_x2 - mean * mean
        ln = (sims - mean) * jax.lax.rsqrt(var + LN_EPS)
        # gamma/beta are folded into w1/b1 in the wrapper; the padded ln lanes are
        # nonzero but only multiply w1's zero rows, so they cannot contaminate h.

        h = jnp.dot(ln.astype(jnp.bfloat16), w1_ref[...],
                    preferred_element_type=jnp.float32) + b1
        h = h * jax.nn.sigmoid(h)   # SiLU (sigmoid on the EUP slot)
        # TODO(synk): FFN dropout is an eval-mode no-op; training-mode forward not implemented.
        ffn = jnp.dot(h.astype(jnp.bfloat16), w2_ref[...],
                      preferred_element_type=jnp.float32) + b2

        out_ref[rows, :] = (ffn + sims).astype(out_ref.dtype)


@functools.partial(jax.jit, static_argnames=("tb",))
def relative_transformer_block(x, anchors, params, *, tb=None):
    """x: (B, D), anchors: (A, D) -> dict mirroring RelativeTransformerBlock.decode."""
    B, D = x.shape
    A, _ = anchors.shape
    H = params["w1"].shape[1]

    # --- lane-dense padding of the anchor / hidden dims --------------------------
    A_pad = _round_up(A, _LANE)
    H_pad = _round_up(H, _LANE)

    cfg = _tpu_config()

    # --- VMEM-budget-derived batch tile (invariants single-buffered) -------------
    x_itemsize = jnp.dtype(x.dtype).itemsize
    invariant = ((D * A_pad + A_pad * H_pad + H_pad * A_pad) * 2    # bf16 weights
                 + (H_pad + A_pad) * 4)                             # f32 biases
    per_row = (2 * D * x_itemsize           # x block, double-buffered
               + 2 * 2 * A_pad * 4          # two f32 output blocks, double-buffered
               + (H_pad + 3 * A_pad) * 4)   # rough live f32 temps per row
    budget = int(cfg["vmem_limit"] * 0.75) - invariant
    # TODO(synk): if the invariant weights alone exceed the budget (huge A/H), add
    # an inner K (over D) loop instead of shrinking the batch tile.
    tb_auto = max(_SUBLANE, (budget // per_row) // _SUBLANE * _SUBLANE)
    tb_cap = tb if tb is not None else cfg["tb_cap"]

    B_r = _round_up(B, _SUBLANE)
    tb_eff = max(_SUBLANE, min(tb_auto, tb_cap, B_r) // _SUBLANE * _SUBLANE)
    # Only split a single full tile when the chip has 2 TensorCores (v7x); on
    # v5e/v6e the grid is a serial loop and splitting just adds per-step overhead.
    if cfg["two_cores"] and B_r >= 2 * _SUBLANE and (B_r + tb_eff - 1) // tb_eff < 2:
        tb_eff = _round_up((B_r + 1) // 2, _SUBLANE)
    B_pad = _round_up(B_r, tb_eff)
    grid = (B_pad // tb_eff,)

    # In-kernel sub-tile chains (each sub-tile row count must stay a multiple of 8).
    if tb_eff % 32 == 0 and tb_eff >= 64:
        n_sub = 4
    elif tb_eff % 16 == 0:
        n_sub = 2
    else:
        n_sub = 1
    sub_tb = tb_eff // n_sub

    # --- hoist grid-invariant work out of the kernel ------------------------------
    f32 = jnp.float32
    # L2-normalize anchors once, transpose to (D, A) and zero-pad to (D, A_pad).
    an = anchors.astype(f32)
    an = an * jax.lax.rsqrt(
        jnp.maximum(jnp.sum(an * an, axis=-1, keepdims=True), L2_EPS * L2_EPS))
    anchT = jnp.pad(an.T, ((0, 0), (0, A_pad - A))).astype(jnp.bfloat16)

    # Fold the LayerNorm affine into the first FFN linear:
    #   (ln*gamma + beta) @ w1 + b1 == ln @ (gamma[:,None]*w1) + (beta@w1 + b1)
    gamma = params["ln_gamma"].astype(f32).reshape(A, 1)
    beta = params["ln_beta"].astype(f32).reshape(1, A)
    w1 = params["w1"].astype(f32)
    w1f = jnp.pad(gamma * w1, ((0, A_pad - A), (0, H_pad - H))).astype(jnp.bfloat16)
    b1f = jnp.pad(beta @ w1 + params["b1"].astype(f32).reshape(1, H),
                  ((0, 0), (0, H_pad - H)))
    w2f = jnp.pad(params["w2"].astype(f32),
                  ((0, H_pad - H), (0, A_pad - A))).astype(jnp.bfloat16)
    b2f = jnp.pad(params["b2"].astype(f32).reshape(1, A), ((0, 0), (0, A_pad - A)))

    # x stays in its native dtype (no extra wrapper pass over x); pad rows only
    # when the batch is not a multiple of the tile.
    x_p = x if B_pad == B else jnp.pad(x, ((0, B_pad - B), (0, 0)))

    # --- advisory cost estimate for the XLA scheduler -----------------------------
    flops = 2 * B_pad * (D * A_pad + A_pad * H_pad + H_pad * A_pad)
    transcendentals = B_pad * (H_pad + 2)               # sigmoid + rsqrts
    bytes_accessed = B_pad * D * x_itemsize + invariant + 2 * B_pad * A_pad * 4

    kernel = functools.partial(_rel_transformer_block_kernel,
                               num_anchors=A, n_sub=n_sub, sub_tb=sub_tb)

    def _inv(shape):
        # Grid-invariant operand: fetched once; single-buffered halves its VMEM.
        return pl.BlockSpec(shape, lambda i: (0, 0), pipeline_mode=pl.Buffered(1))

    out_p, sims_p = pl.pallas_call(
        kernel,
        out_shape=(
            jax.ShapeDtypeStruct((B_pad, A_pad), jnp.float32),
            jax.ShapeDtypeStruct((B_pad, A_pad), jnp.float32),
        ),
        grid_spec=pltpu.PrefetchScalarGridSpec(
            num_scalar_prefetch=0,
            grid=grid,
            in_specs=[
                pl.BlockSpec((tb_eff, D), lambda i: (i, 0)),   # x: tiled over batch
                _inv((D, A_pad)),      # anchors^T
                _inv((A_pad, H_pad)),  # gamma-folded w1
                _inv((1, H_pad)),      # beta-folded b1
                _inv((H_pad, A_pad)),  # w2
                _inv((1, A_pad)),      # b2
            ],
            out_specs=[
                pl.BlockSpec((tb_eff, A_pad), lambda i: (i, 0)),  # lane-dense output
                pl.BlockSpec((tb_eff, A_pad), lambda i: (i, 0)),
            ],
        ),
        compiler_params=pltpu.CompilerParams(
            dimension_semantics=("parallel",),
            vmem_limit_bytes=cfg["vmem_limit"],
        ),
        cost_estimate=pl.CostEstimate(
            flops=flops,
            transcendentals=transcendentals,
            bytes_accessed=bytes_accessed,
        ),
    )(x_p, anchT, w1f, b1f, w2f, b2f)

    # NOTE: downstream consumers that tolerate bf16 / padded views can skip this
    # extra pass entirely; kept f32 + true-shape views here for fidelity.
    if B_pad == B and A_pad == A:
        out, sims = out_p, sims_p
    else:
        out, sims = out_p[:B, :A], sims_p[:B, :A]

    # Mirror the dict returned by RelativeTransformerBlock.decode
    return {
        "output": out,
        "untrasformed_attended": sims,
        "similarities": sims,
        "non_quantized_similarities": sims,
        "anchors_latent": anchors,
        "batch_latent": x,
    }


def _reference(x, anchors, params):
    """Plain-JAX reference: f32 F.normalize, bf16 MXU operands with f32 accumulation,
    LayerNorm (un-folded affine) -> Linear -> SiLU -> Linear + residual."""
    xn = x * jax.lax.rsqrt(
        jnp.maximum(jnp.sum(x * x, axis=-1, keepdims=True), L2_EPS * L2_EPS))
    an = anchors * jax.lax.rsqrt(
        jnp.maximum(jnp.sum(anchors * anchors, axis=-1, keepdims=True), L2_EPS * L2_EPS))
    sims = jnp.dot(xn.astype(jnp.bfloat16), an.T.astype(jnp.bfloat16),
                   preferred_element_type=jnp.float32)
    mean = sims.mean(-1, keepdims=True)
    var = ((sims - mean) ** 2).mean(-1, keepdims=True)
    ln = (sims - mean) * jax.lax.rsqrt(var + LN_EPS) * params["ln_gamma"] + params["ln_beta"]
    h = jnp.dot(ln.astype(jnp.bfloat16), params["w1"].astype(jnp.bfloat16),
                preferred_element_type=jnp.float32) + params["b1"]
    h = h * jax.nn.sigmoid(h)
    out = jnp.dot(h.astype(jnp.bfloat16), params["w2"].astype(jnp.bfloat16),
                  preferred_element_type=jnp.float32) + params["b2"] + sims
    return out, sims


if __name__ == "__main__":
    B, D, A = 32, 32, 16     # batch, feature dim, num anchors (small test shapes)
    H = 4 * A                # FFN hidden dim (LearningBlock uses 4x expansion)

    key = jax.random.PRNGKey(0)
    kx, ka, kg, kb, kw1, kw2 = jax.random.split(key, 6)

    x = jax.random.normal(kx, (B, D), dtype=jnp.float32)
    anchors = jax.random.normal(ka, (A, D), dtype=jnp.float32)

    params = {
        "ln_gamma": 1.0 + 0.1 * jax.random.normal(kg, (A,), dtype=jnp.float32),
        "ln_beta": 0.05 * jax.random.normal(kb, (A,), dtype=jnp.float32),
        "w1": 0.02 * jax.random.normal(kw1, (A, H), dtype=jnp.float32),
        "b1": jnp.zeros((H,), jnp.float32),
        "w2": 0.02 * jax.random.normal(kw2, (H, A), dtype=jnp.float32),
        "b2": jnp.zeros((A,), jnp.float32),
    }

    result = relative_transformer_block(x, anchors, params)
    out = jax.block_until_ready(result["output"])
    sims = jax.block_until_ready(result["similarities"])

    ref_out, ref_sims = _reference(x, anchors, params)
    assert out.shape == (B, A) and sims.shape == (B, A)
    assert jnp.allclose(sims, ref_sims, atol=1e-3, rtol=1e-3), \
        float(jnp.max(jnp.abs(sims - ref_sims)))
    assert jnp.allclose(out, ref_out, atol=2e-3, rtol=2e-3), \
        float(jnp.max(jnp.abs(out - ref_out)))

    print("KERNEL_OK")
</pallas_src>

<mosaic_0001>
module attributes {stable_mosaic.version = 11 : i64} {
  func.func @_rel_transformer_block_kernel(%arg0: i32, %arg1: memref<32x32xf32, #tpu.memory_space<vmem>>, %arg2: memref<32x128xbf16, #tpu.memory_space<vmem>>, %arg3: memref<128x128xbf16, #tpu.memory_space<vmem>>, %arg4: memref<1x128xf32, #tpu.memory_space<vmem>>, %arg5: memref<128x128xbf16, #tpu.memory_space<vmem>>, %arg6: memref<1x128xf32, #tpu.memory_space<vmem>>, %arg7: memref<32x128xf32, #tpu.memory_space<vmem>>, %arg8: memref<32x128xf32, #tpu.memory_space<vmem>>) attributes {dimension_semantics = [#tpu.dimension_semantics<parallel>], iteration_bounds = array<i64: 1>, scalar_prefetch = 0 : i64, scratch_operands = 0 : i64, tpu.core_type = #tpu.core_type<tc>, window_params = [{transform_indices = @transform_0, window_bounds = array<i64: 32, 32>}, {pipeline_mode = #tpu.pipeline_mode<synchronous>, transform_indices = @transform_1, window_bounds = array<i64: 32, 128>}, {pipeline_mode = #tpu.pipeline_mode<synchronous>, transform_indices = @transform_2, window_bounds = array<i64: 128, 128>}, {pipeline_mode = #tpu.pipeline_mode<synchronous>, transform_indices = @transform_3, window_bounds = array<i64: 1, 128>}, {pipeline_mode = #tpu.pipeline_mode<synchronous>, transform_indices = @transform_4, window_bounds = array<i64: 128, 128>}, {pipeline_mode = #tpu.pipeline_mode<synchronous>, transform_indices = @transform_5, window_bounds = array<i64: 1, 128>}, {transform_indices = @transform_6, window_bounds = array<i64: 32, 128>}, {transform_indices = @transform_7, window_bounds = array<i64: 32, 128>}]} {
    %c0 = arith.constant 0 : index
    %c0_0 = arith.constant 0 : index
    %0 = vector.load %arg4[%c0, %c0_0] : memref<1x128xf32, #tpu.memory_space<vmem>>, vector<1x128xf32>
    %c0_1 = arith.constant 0 : index
    %c0_2 = arith.constant 0 : index
    %1 = vector.load %arg6[%c0_1, %c0_2] : memref<1x128xf32, #tpu.memory_space<vmem>>, vector<1x128xf32>
    %c0_3 = arith.constant 0 : index
    %c0_4 = arith.constant 0 : index
    %2 = vector.load %arg1[%c0_3, %c0_4] : memref<32x32xf32, #tpu.memory_space<vmem>>, vector<16x32xf32>
    %3 = arith.mulf %2, %2 : vector<16x32xf32>
    %cst = arith.constant dense<0.000000e+00> : vector<16xf32>
    %4 = vector.multi_reduction <add>, %3, %cst [1] : vector<16x32xf32> to vector<16xf32>
    %5 = vector.shape_cast %4 : vector<16xf32> to vector<16x1xf32>
    %cst_5 = arith.constant 1.000000e-24 : f32
    %6 = vector.broadcast %cst_5 : f32 to vector<16x1xf32>
    %7 = arith.maximumf %5, %6 : vector<16x1xf32>
    %8 = math.rsqrt %7 : vector<16x1xf32>
    %9 = vector.broadcast %8 : vector<16x1xf32> to vector<16x32xf32>
    %10 = arith.mulf %2, %9 : vector<16x32xf32>
    %11 = arith.truncf %10 : vector<16x32xf32> to vector<16x32xbf16>
    %c0_6 = arith.constant 0 : index
    %c0_7 = arith.constant 0 : index
    %12 = vector.load %arg2[%c0_6, %c0_7] : memref<32x128xbf16, #tpu.memory_space<vmem>>, vector<32x128xbf16>
    %cst_8 = arith.constant dense<0.000000e+00> : vector<16x128xf32>
    %13 = tpu.matmul %11, %12, %cst_8 {dimension_numbers = #tpu.dot_dimension_numbers<[1], [0], [0], [1], [0, 0, 1, 1], [], []>} : vector<16x32xbf16>, vector<32x128xbf16>, vector<16x128xf32> -> vector<16x128xf32>
    %c0_9 = arith.constant 0 : index
    %c0_10 = arith.constant 0 : index
    %14 = vector.load %arg8[%c0_9, %c0_10] : memref<32x128xf32, #tpu.memory_space<vmem>>, vector<16x128xf32>
    tpu.vector_store %arg8[%c0_9, %c0_10], %13 {strides = array<i32>} : memref<32x128xf32, #tpu.memory_space<vmem>>, vector<16x128xf32>,
    %cst_11 = arith.constant dense<0.000000e+00> : vector<16xf32>
    %15 = vector.multi_reduction <add>, %13, %cst_11 [1] : vector<16x128xf32> to vector<16xf32>
    %16 = vector.shape_cast %15 : vector<16xf32> to vector<16x1xf32>
    %cst_12 = arith.constant 6.250000e-02 : f32
    %17 = vector.broadcast %cst_12 : f32 to vector<16x1xf32>
    %18 = arith.mulf %16, %17 : vector<16x1xf32>
    %19 = arith.mulf %13, %13 : vector<16x128xf32>
    %cst_13 = arith.constant dense<0.000000e+00> : vector<16xf32>
    %20 = vector.multi_reduction <add>, %19, %cst_13 [1] : vector<16x128xf32> to vector<16xf32>
    %21 = vector.shape_cast %20 : vector<16xf32> to vector<16x1xf32>
    %cst_14 = arith.constant 6.250000e-02 : f32
    %22 = vector.broadcast %cst_14 : f32 to vector<16x1xf32>
    %23 = arith.mulf %21, %22 : vector<16x1xf32>
    %24 = arith.mulf %18, %18 : vector<16x1xf32>
    %25 = arith.subf %23, %24 : vector<16x1xf32>
    %26 = vector.broadcast %18 : vector<16x1xf32> to vector<16x128xf32>
    %27 = arith.subf %13, %26 : vector<16x128xf32>
    %cst_15 = arith.constant 9.99999974E-6 : f32
    %28 = vector.broadcast %cst_15 : f32 to vector<16x1xf32>
    %29 = arith.addf %25, %28 : vector<16x1xf32>
    %30 = math.rsqrt %29 : vector<16x1xf32>
    %31 = vector.broadcast %30 : vector<16x1xf32> to vector<16x128xf32>
    %32 = arith.mulf %27, %31 : vector<16x128xf32>
    %33 = arith.truncf %32 : vector<16x128xf32> to vector<16x128xbf16>
    %c0_16 = arith.constant 0 : index
    %c0_17 = arith.constant 0 : index
    %34 = vector.load %arg3[%c0_16, %c0_17] : memref<128x128xbf16, #tpu.memory_space<vmem>>, vector<128x128xbf16>
    %cst_18 = arith.constant dense<0.000000e+00> : vector<16x128xf32>
    %35 = tpu.matmul %33, %34, %cst_18 {dimension_numbers = #tpu.dot_dimension_numbers<[1], [0], [0], [1], [0, 0, 1, 1], [], []>} : vector<16x128xbf16>, vector<128x128xbf16>, vector<16x128xf32> -> vector<16x128xf32>
    %36 = vector.broadcast %0 : vector<1x128xf32> to vector<16x128xf32>
    %37 = arith.addf %35, %36 : vector<16x128xf32>
    %38 = arith.negf %37 : vector<16x128xf32>
    %39 = math.exp %38 : vector<16x128xf32>
    %cst_19 = arith.constant 1.000000e+00 : f32
    %40 = vector.broadcast %cst_19 : f32 to vector<16x128xf32>
    %41 = arith.addf %40, %39 : vector<16x128xf32>
    %42 = arith.divf %40, %41 : vector<16x128xf32>
    %43 = arith.mulf %37, %42 : vector<16x128xf32>
    %44 = arith.truncf %43 : vector<16x128xf32> to vector<16x128xbf16>
    %c0_20 = arith.constant 0 : index
    %c0_21 = arith.constant 0 : index
    %45 = vector.load %arg5[%c0_20, %c0_21] : memref<128x128xbf16, #tpu.memory_space<vmem>>, vector<128x128xbf16>
    %cst_22 = arith.constant dense<0.000000e+00> : vector<16x128xf32>
    %46 = tpu.matmul %44, %45, %cst_22 {dimension_numbers = #tpu.dot_dimension_numbers<[1], [0], [0], [1], [0, 0, 1, 1], [], []>} : vector<16x128xbf16>, vector<128x128xbf16>, vector<16x128xf32> -> vector<16x128xf32>
    %47 = vector.broadcast %1 : vector<1x128xf32> to vector<16x128xf32>
    %48 = arith.addf %46, %47 : vector<16x128xf32>
    %49 = arith.addf %48, %13 : vector<16x128xf32>
    %c0_23 = arith.constant 0 : index
    %c0_24 = arith.constant 0 : index
    %50 = vector.load %arg7[%c0_23, %c0_24] : memref<32x128xf32, #tpu.memory_space<vmem>>, vector<16x128xf32>
    tpu.vector_store %arg7[%c0_23, %c0_24], %49 {strides = array<i32>} : memref<32x128xf32, #tpu.memory_space<vmem>>, vector<16x128xf32>,
    %c16 = arith.constant 16 : index
    %c0_25 = arith.constant 0 : index
    %51 = vector.load %arg1[%c16, %c0_25] : memref<32x32xf32, #tpu.memory_space<vmem>>, vector<16x32xf32>
    %52 = arith.mulf %51, %51 : vector<16x32xf32>
    %cst_26 = arith.constant dense<0.000000e+00> : vector<16xf32>
    %53 = vector.multi_reduction <add>, %52, %cst_26 [1] : vector<16x32xf32> to vector<16xf32>
    %54 = vector.shape_cast %53 : vector<16xf32> to vector<16x1xf32>
    %cst_27 = arith.constant 1.000000e-24 : f32
    %55 = vector.broadcast %cst_27 : f32 to vector<16x1xf32>
    %56 = arith.maximumf %54, %55 : vector<16x1xf32>
    %57 = math.rsqrt %56 : vector<16x1xf32>
    %58 = vector.broadcast %57 : vector<16x1xf32> to vector<16x32xf32>
    %59 = arith.mulf %51, %58 : vector<16x32xf32>
    %60 = arith.truncf %59 : vector<16x32xf32> to vector<16x32xbf16>
    %c0_28 = arith.constant 0 : index
    %c0_29 = arith.constant 0 : index
    %61 = vector.load %arg2[%c0_28, %c0_29] : memref<32x128xbf16, #tpu.memory_space<vmem>>, vector<32x128xbf16>
    %cst_30 = arith.constant dense<0.000000e+00> : vector<16x128xf32>
    %62 = tpu.matmul %60, %61, %cst_30 {dimension_numbers = #tpu.dot_dimension_numbers<[1], [0], [0], [1], [0, 0, 1, 1], [], []>} : vector<16x32xbf16>, vector<32x128xbf16>, vector<16x128xf32> -> vector<16x128xf32>
    %c16_31 = arith.constant 16 : index
    %c0_32 = arith.constant 0 : index
    %63 = vector.load %arg8[%c16_31, %c0_32] : memref<32x128xf32, #tpu.memory_space<vmem>>, vector<16x128xf32>
    tpu.vector_store %arg8[%c16_31, %c0_32], %62 {strides = array<i32>} : memref<32x128xf32, #tpu.memory_space<vmem>>, vector<16x128xf32>,
    %cst_33 = arith.constant dense<0.000000e+00> : vector<16xf32>
    %64 = vector.multi_reduction <add>, %62, %cst_33 [1] : vector<16x128xf32> to vector<16xf32>
    %65 = vector.shape_cast %64 : vector<16xf32> to vector<16x1xf32>
    %cst_34 = arith.constant 6.250000e-02 : f32
    %66 = vector.broadcast %cst_34 : f32 to vector<16x1xf32>
    %67 = arith.mulf %65, %66 : vector<16x1xf32>
    %68 = arith.mulf %62, %62 : vector<16x128xf32>
    %cst_35 = arith.constant dense<0.000000e+00> : vector<16xf32>
    %69 = vector.multi_reduction <add>, %68, %cst_35 [1] : vector<16x128xf32> to vector<16xf32>
    %70 = vector.shape_cast %69 : vector<16xf32> to vector<16x1xf32>
    %cst_36 = arith.constant 6.250000e-02 : f32
    %71 = vector.broadcast %cst_36 : f32 to vector<16x1xf32>
    %72 = arith.mulf %70, %71 : vector<16x1xf32>
    %73 = arith.mulf %67, %67 : vector<16x1xf32>
    %74 = arith.subf %72, %73 : vector<16x1xf32>
    %75 = vector.broadcast %67 : vector<16x1xf32> to vector<16x128xf32>
    %76 = arith.subf %62, %75 : vector<16x128xf32>
    %cst_37 = arith.constant 9.99999974E-6 : f32
    %77 = vector.broadcast %cst_37 : f32 to vector<16x1xf32>
    %78 = arith.addf %74, %77 : vector<16x1xf32>
    %79 = math.rsqrt %78 : vector<16x1xf32>
    %80 = vector.broadcast %79 : vector<16x1xf32> to vector<16x128xf32>
    %81 = arith.mulf %76, %80 : vector<16x128xf32>
    %82 = arith.truncf %81 : vector<16x128xf32> to vector<16x128xbf16>
    %c0_38 = arith.constant 0 : index
    %c0_39 = arith.constant 0 : index
    %83 = vector.load %arg3[%c0_38, %c0_39] : memref<128x128xbf16, #tpu.memory_space<vmem>>, vector<128x128xbf16>
    %cst_40 = arith.constant dense<0.000000e+00> : vector<16x128xf32>
    %84 = tpu.matmul %82, %83, %cst_40 {dimension_numbers = #tpu.dot_dimension_numbers<[1], [0], [0], [1], [0, 0, 1, 1], [], []>} : vector<16x128xbf16>, vector<128x128xbf16>, vector<16x128xf32> -> vector<16x128xf32>
    %85 = vector.broadcast %0 : vector<1x128xf32> to vector<16x128xf32>
    %86 = arith.addf %84, %85 : vector<16x128xf32>
    %87 = arith.negf %86 : vector<16x128xf32>
    %88 = math.exp %87 : vector<16x128xf32>
    %cst_41 = arith.constant 1.000000e+00 : f32
    %89 = vector.broadcast %cst_41 : f32 to vector<16x128xf32>
    %90 = arith.addf %89, %88 : vector<16x128xf32>
    %91 = arith.divf %89, %90 : vector<16x128xf32>
    %92 = arith.mulf %86, %91 : vector<16x128xf32>
    %93 = arith.truncf %92 : vector<16x128xf32> to vector<16x128xbf16>
    %c0_42 = arith.constant 0 : index
    %c0_43 = arith.constant 0 : index
    %94 = vector.load %arg5[%c0_42, %c0_43] : memref<128x128xbf16, #tpu.memory_space<vmem>>, vector<128x128xbf16>
    %cst_44 = arith.constant dense<0.000000e+00> : vector<16x128xf32>
    %95 = tpu.matmul %93, %94, %cst_44 {dimension_numbers = #tpu.dot_dimension_numbers<[1], [0], [0], [1], [0, 0, 1, 1], [], []>} : vector<16x128xbf16>, vector<128x128xbf16>, vector<16x128xf32> -> vector<16x128xf32>
    %96 = vector.broadcast %1 : vector<1x128xf32> to vector<16x128xf32>
    %97 = arith.addf %95, %96 : vector<16x128xf32>
    %98 = arith.addf %97, %62 : vector<16x128xf32>
    %c16_45 = arith.constant 16 : index
    %c0_46 = arith.constant 0 : index
    %99 = vector.load %arg7[%c16_45, %c0_46] : memref<32x128xf32, #tpu.memory_space<vmem>>, vector<16x128xf32>
    tpu.vector_store %arg7[%c16_45, %c0_46], %98 {strides = array<i32>} : memref<32x128xf32, #tpu.memory_space<vmem>>, vector<16x128xf32>,
    return
  }
  func.func @transform_0(%arg0: i32) -> (i32, i32) {
    %c0_i32 = arith.constant 0 : i32
    %c0_i32_0 = arith.constant 0 : i32
    return %arg0, %c0_i32 : i32, i32
  }
  func.func @transform_1(%arg0: i32) -> (i32, i32) {
    %c0_i32 = arith.constant 0 : i32
    %c0_i32_0 = arith.constant 0 : i32
    %c0_i32_1 = arith.constant 0 : i32
    return %c0_i32, %c0_i32_0 : i32, i32
  }
  func.func @transform_2(%arg0: i32) -> (i32, i32) {
    %c0_i32 = arith.constant 0 : i32
    %c0_i32_0 = arith.constant 0 : i32
    %c0_i32_1 = arith.constant 0 : i32
    return %c0_i32, %c0_i32_0 : i32, i32
  }
  func.func @transform_3(%arg0: i32) -> (i32, i32) {
    %c0_i32 = arith.constant 0 : i32
    %c0_i32_0 = arith.constant 0 : i32
    %c0_i32_1 = arith.constant 0 : i32
    return %c0_i32, %c0_i32_0 : i32, i32
  }
  func.func @transform_4(%arg0: i32) -> (i32, i32) {
    %c0_i32 = arith.constant 0 : i32
    %c0_i32_0 = arith.constant 0 : i32
    %c0_i32_1 = arith.constant 0 : i32
    return %c0_i32, %c0_i32_0 : i32, i32
  }
  func.func @transform_5(%arg0: i32) -> (i32, i32) {
    %c0_i32 = arith.constant 0 : i32
    %c0_i32_0 = arith.constant 0 : i32
    %c0_i32_1 = arith.constant 0 : i32
    return %c0_i32, %c0_i32_0 : i32, i32
  }
  func.func @transform_6(%arg0: i32) -> (i32, i32) {
    %c0_i32 = arith.constant 0 : i32
    %c0_i32_0 = arith.constant 0 : i32
    return %arg0, %c0_i32 : i32, i32
  }
  func.func @transform_7(%arg0: i32) -> (i32, i32) {
    %c0_i32 = arith.constant 0 : i32
    %c0_i32_0 = arith.constant 0 : i32
    return %arg0, %c0_i32 : i32, i32
  }
}

</mosaic_0001>

<llo_original>
// kernel: relative_transformer_block.1
$region0: #{relative_transformer_block.1}
  #allocation0 [shape = 'u32[]', space=smem, size = 0x4, offset = 0x4, fixed_abs, tag = 'smem constant byte address 0x4 - core index']
  #allocation1 [shape = 'u32[144,128]{1,0:T(1,128)}', space=vmem, size = 0x12000, scoped, tag = 'internal scratch']
  %s0 = inlined_call_operand.vmem [shape: f32[32,32], index: 0, kind: input, shape index: {}]
  %s1 = inlined_call_operand.vmem [shape: bf16[32,128], index: 1, kind: input, shape index: {}]
  %s2 = inlined_call_operand.vmem [shape: bf16[128,128], index: 2, kind: input, shape index: {}]
  %s3 = inlined_call_operand.vmem [shape: f32[1,128], index: 3, kind: input, shape index: {}]
  %s4 = inlined_call_operand.vmem [shape: bf16[128,128], index: 4, kind: input, shape index: {}]
  %s5 = inlined_call_operand.vmem [shape: f32[1,128], index: 5, kind: input, shape index: {}]
  %s6 = inlined_call_operand.vmem [shape: f32[32,128], index: 6, kind: output, shape index: {0}]
  %s7 = inlined_call_operand.vmem [shape: f32[32,128], index: 7, kind: output, shape index: {1}]
  %8 = xla_tuple %s6, %s7
  %s9 = sld [smem:[#allocation0]]
  $region42: #{relative_transformer_block.1} parent=0
    _
  %s11 = ssub.s32 1, %s9
  %s12 = scalar_select 0, %s11, %s9
  // Predicated region
  $region2: #{relative_transformer_block.1} parent=0 // pred_check
    _
  $region3: #{relative_transformer_block.1} parent=0 // pred_check_branch
    %14 = sbr.rel (0) target = $region5
  $region4: #{relative_transformer_block.1} parent=0 // pred_region
    _
  $region5: #{relative_transformer_block.1} parent=0 // pred_fallthru
    _
  // Predicated region
  $region6: #{relative_transformer_block.1} parent=0 // pred_check
    _
  $region7: #{relative_transformer_block.1} parent=0 // pred_check_branch
    %16 = sbr.rel (0) target = $region9
  $region8: #{relative_transformer_block.1} parent=0 // pred_region
    _
  $region9: #{relative_transformer_block.1} parent=0 // pred_fallthru
    _
  // Predicated region
  $region10: #{relative_transformer_block.1} parent=0 // pred_check
    _
  $region11: #{relative_transformer_block.1} parent=0 // pred_check_branch
    %18 = sbr.rel (0) target = $region13
  $region12: #{relative_transformer_block.1} parent=0 // pred_region
    _
  $region13: #{relative_transformer_block.1} parent=0 // pred_fallthru
    _
  // Predicated region
  $region14: #{relative_transformer_block.1} parent=0 // pred_check
    _
  $region15: #{relative_transformer_block.1} parent=0 // pred_check_branch
    %20 = sbr.rel (0) target = $region17
  $region16: #{relative_transformer_block.1} parent=0 // pred_region
    _
  $region17: #{relative_transformer_block.1} parent=0 // pred_fallthru
    _
  // Predicated region
  $region18: #{relative_transformer_block.1} parent=0 // pred_check
    _
  $region19: #{relative_transformer_block.1} parent=0 // pred_check_branch
    %22 = sbr.rel (0) target = $region21
  $region20: #{relative_transformer_block.1} parent=0 // pred_region
    _
  $region21: #{relative_transformer_block.1} parent=0 // pred_fallthru
    _
  // Predicated region
  $region22: #{relative_transformer_block.1} parent=0 // pred_check
    _
  $region23: #{relative_transformer_block.1} parent=0 // pred_check_branch
    %24 = sbr.rel (0) target = $region25
  $region24: #{relative_transformer_block.1} parent=0 // pred_region
    _
  $region25: #{relative_transformer_block.1} parent=0 // pred_fallthru
    _
  %v26 = vld [vmem:[%s3] sm:$0x1]
  %v27 = vld [vmem:[%s5] sm:$0x1]
  %v28 = vld [vmem:[%s0] sm:$0xff]
  %v29 = vld [vmem:[%s0 + $0x8] sm:$0xff]
  %v30 = vmul.f32 %v28, %v28
  %v31 = vmul.f32 %v29, %v29
  %vm32 = vcmask 261120
  %v33 = vsel %vm32, %v30, 0.0
  %34 = vadd.xlane.f32.xlu0 %v33
  %v35 = vpop.xlane.xlu0 %34
  %v36 = vsel %vm32, %v31, 0.0
  %37 = vadd.xlane.f32.xlu0 %v36
  %v38 = vpop.xlane.xlu0 %37
  %v39 = vmax.f32 %v35, 1e-24
  %v40 = vmax.f32 %v38, 1e-24
  %v41 = vrsqrt.pop %v39
  %v42 = vrsqrt.pop %v40
  %v43 = vmul.f32 %v28, %v41
  %v44 = vmul.f32 %v29, %v42
  %v45 = vpack.c.bf16 %v44, %v43
  %v46 = vld [vmem:[%s1] sm:$0xf]
  %v47 = vld [vmem:[%s1 + $0x4] sm:$0xf]
  %v48 = vld [vmem:[%s1 + $0x8] sm:$0xf]
  %v49 = vld [vmem:[%s1 + $0xc] sm:$0xf]
  %v54 = vunpack.c.l.b16 %v46
  %v55 = vunpack.c.l.b16 %v47
  %v56 = vunpack.c.l.b16 %v48
  %v57 = vunpack.c.l.b16 %v49
  %v58 = vpack.c.b16 %v55, %v54
  %v59 = vpack.c.b16 %v57, %v56
  %v63 = vsel %vm32, %v45, 0
  %65 = vmatprep.subr.bf16.mxu0 0
  %66 = vmatpush1.bf16.msra.mxu0 %v58
  %67 = vmatprep.subr.bf16.mxu0 0
  %68 = vmatpush1.bf16.msra.mxu0 %v59
  %69 = vmatprep.subr.bf16.mxu0 0
  %70 = vmatpush1.bf16.msra.mxu0 0
  %71 = vmatprep.subr.bf16.mxu0 0
  %72 = vmatpush1.bf16.msra.mxu0 0
  %73 = vmatprep.subr.bf16.mxu0 0
  %74 = vmatpush1.bf16.msra.mxu0 0
  %75 = vmatprep.subr.bf16.mxu0 0
  %76 = vmatpush1.bf16.msra.mxu0 0
  %77 = vmatprep.subr.bf16.mxu0 0
  %78 = vmatpush1.bf16.msra.mxu0 0
  %79 = vmatprep.subr.bf16.mxu0 0
  %80 = vmatpush1.bf16.msra.mxu0 0
  %81 = vmatprep.subr.bf16.mxu0 0
  %82 = vmatpush1.bf16.msra.mxu0 0
  %83 = vmatprep.subr.bf16.mxu0 0
  %84 = vmatpush1.bf16.msra.mxu0 0
  %85 = vmatprep.subr.bf16.mxu0 0
  %86 = vmatpush1.bf16.msra.mxu0 0
  %87 = vmatprep.subr.bf16.mxu0 0
  %88 = vmatpush1.bf16.msra.mxu0 0
  %89 = vmatprep.subr.bf16.mxu0 0
  %90 = vmatpush1.bf16.msra.mxu0 0
  %91 = vmatprep.subr.bf16.mxu0 0
  %92 = vmatpush1.bf16.msra.mxu0 0
  %93 = vmatprep.subr.bf16.mxu0 0
  %94 = vmatpush1.bf16.msra.mxu0 0
  %95 = vmatprep.subr.bf16.mxu0 0
  %96 = vmatpush1.bf16.msra.mxu0 0
  %97 = vmatprep.mubr.bf16.mxu0 0
  %98 = vmatmul.mubr.bf16.gmra.mrb[0].mxu0 %v63
  %v99 = vpop.f32.mrb[0].mxu0
  %v100 = vadd.f32 0.0, %v99
  %v101 = vpop.f32.mrb[0].mxu0
  %v102 = vpop.f32.mrb[0].mxu0
  %v103 = vadd.f32 0.0, %v102
  %v104 = vpop.f32.mrb[0].mxu0
  %105 = vdwg.mxu0
  %106 = vst [vmem:[%s7] sm:$0xff] %v100
  %107 = vst [vmem:[%s7 + $0x8] sm:$0xff] %v103
  %108 = vadd.xlane.f32.xlu0 %v100
  %v109 = vpop.xlane.xlu0 %108
  %110 = vadd.xlane.f32.xlu0 %v103
  %v111 = vpop.xlane.xlu0 %110
  %v112 = vmul.f32 %v109, 0.0625
  %v113 = vmul.f32 %v111, 0.0625
  %v114 = vmul.f32 %v100, %v100
  %v115 = vmul.f32 %v103, %v103
  %116 = vadd.xlane.f32.xlu0 %v114
  %v117 = vpop.xlane.xlu0 %116
  %118 = vadd.xlane.f32.xlu0 %v115
  %v119 = vpop.xlane.xlu0 %118
  %v120 = vmul.f32 %v117, 0.0625
  %v121 = vmul.f32 %v119, 0.0625
  %v122 = vmul.f32 %v112, %v112
  %v123 = vmul.f32 %v113, %v113
  %v124 = vsub.f32 %v120, %v122
  %v125 = vsub.f32 %v121, %v123
  %v126 = vsub.f32 %v100, %v112
  %v127 = vsub.f32 %v103, %v113
  %v128 = vadd.f32 %v124, 1e-05
  %v129 = vadd.f32 %v125, 1e-05
  %v130 = vrsqrt.pop %v128
  %v131 = vrsqrt.pop %v129
  %v132 = vmul.f32 %v126, %v130
  %v133 = vmul.f32 %v127, %v131
  %v134 = vpack.c.bf16 %v133, %v132
  %v135 = vld [vmem:[%s2] sm:$0xf]
  %v136 = vld [vmem:[%s2 + $0x4] sm:$0xf]
  %v137 = vld [vmem:[%s2 + $0x8] sm:$0xf]
  %v138 = vld [vmem:[%s2 + $0xc] sm:$0xf]
  %v139 = vld [vmem:[%s2 + $0x10] sm:$0xf]
  %v140 = vld [vmem:[%s2 + $0x14] sm:$0xf]
  %v141 = vld [vmem:[%s2 + $0x18] sm:$0xf]
  %v142 = vld [vmem:[%s2 + $0x1c] sm:$0xf]
  %v143 = vld [vmem:[%s2 + $0x20] sm:$0xf]
  %v144 = vld [vmem:[%s2 + $0x24] sm:$0xf]
  %v145 = vld [vmem:[%s2 + $0x28] sm:$0xf]
  %v146 = vld [vmem:[%s2 + $0x2c] sm:$0xf]
  %v147 = vld [vmem:[%s2 + $0x30] sm:$0xf]
  %v148 = vld [vmem:[%s2 + $0x34] sm:$0xf]
  %v149 = vld [vmem:[%s2 + $0x38] sm:$0xf]
  %v150 = vld [vmem:[%s2 + $0x3c] sm:$0xf]
  %v152 = vlaneseq
  %v153 = vshrl.u32 %v152, 7
  %v154 = vsub.s32 0, %v153
  %v155 = vrot.slane %v26, %v154
  %v173 = vunpack.c.l.b16 %v135
  %v174 = vunpack.c.l.b16 %v136
  %v175 = vunpack.c.l.b16 %v137
  %v176 = vunpack.c.l.b16 %v138
  %v177 = vunpack.c.l.b16 %v139
  %v178 = vunpack.c.l.b16 %v140
  %v179 = vunpack.c.l.b16 %v141
  %v180 = vunpack.c.l.b16 %v142
  %v181 = vunpack.c.l.b16 %v143
  %v182 = vunpack.c.l.b16 %v144
  %v183 = vunpack.c.l.b16 %v145
  %v184 = vunpack.c.l.b16 %v146
  %v185 = vunpack.c.l.b16 %v147
  %v186 = vunpack.c.l.b16 %v148
  %v187 = vunpack.c.l.b16 %v149
  %v188 = vunpack.c.l.b16 %v150
  %v189 = vpack.c.b16 %v174, %v173
  %v190 = vpack.c.b16 %v176, %v175
  %v191 = vpack.c.b16 %v178, %v177
  %v192 = vpack.c.b16 %v180, %v179
  %v193 = vpack.c.b16 %v182, %v181
  %v194 = vpack.c.b16 %v184, %v183
  %v195 = vpack.c.b16 %v186, %v185
  %v196 = vpack.c.b16 %v188, %v187
  %205 = vmatprep.subr.bf16.mxu0 0
  %206 = vmatpush1.bf16.msra.mxu0 %v189
  %207 = vmatprep.subr.bf16.mxu0 0
  %208 = vmatpush1.bf16.msra.mxu0 %v190
  %209 = vmatprep.subr.bf16.mxu0 0
  %210 = vmatpush1.bf16.msra.mxu0 %v191
  %211 = vmatprep.subr.bf16.mxu0 0
  %212 = vmatpush1.bf16.msra.mxu0 %v192
  %213 = vmatprep.subr.bf16.mxu0 0
  %214 = vmatpush1.bf16.msra.mxu0 %v193
  %215 = vmatprep.subr.bf16.mxu0 0
  %216 = vmatpush1.bf16.msra.mxu0 %v194
  %217 = vmatprep.subr.bf16.mxu0 0
  %218 = vmatpush1.bf16.msra.mxu0 %v195
  %219 = vmatprep.subr.bf16.mxu0 0
  %220 = vmatpush1.bf16.msra.mxu0 %v196
  %221 = vmatprep.subr.bf16.mxu0 0
  %222 = vmatpush1.bf16.msra.mxu0 0
  %223 = vmatprep.subr.bf16.mxu0 0
  %224 = vmatpush1.bf16.msra.mxu0 0
  %225 = vmatprep.subr.bf16.mxu0 0
  %226 = vmatpush1.bf16.msra.mxu0 0
  %227 = vmatprep.subr.bf16.mxu0 0
  %228 = vmatpush1.bf16.msra.mxu0 0
  %229 = vmatprep.subr.bf16.mxu0 0
  %230 = vmatpush1.bf16.msra.mxu0 0
  %231 = vmatprep.subr.bf16.mxu0 0
  %232 = vmatpush1.bf16.msra.mxu0 0
  %233 = vmatprep.subr.bf16.mxu0 0
  %234 = vmatpush1.bf16.msra.mxu0 0
  %235 = vmatprep.subr.bf16.mxu0 0
  %236 = vmatpush1.bf16.msra.mxu0 0
  %237 = vmatprep.mubr.bf16.mxu0 0
  %238 = vmatmul.mubr.bf16.gmra.mrb[0].mxu0 %v134
  %v239 = vpop.f32.mrb[0].mxu0
  %v240 = vadd.f32 %v155, %v239
  %v241 = vpop.f32.mrb[0].mxu0
  %v242 = vpop.f32.mrb[0].mxu0
  %v243 = vadd.f32 %v155, %v242
  %v244 = vpop.f32.mrb[0].mxu0
  %245 = vdwg.mxu0
  %v246 = vxor.u32 %v240, 2147483648
  %v247 = vxor.u32 %v243, 2147483648
  %v248 = vmul.f32 %v246, 1.442695
  %v249 = vpow.pop %v248
  %v250 = vmul.f32 %v247, 1.442695
  %v251 = vpow.pop %v250
  %v252 = vadd.f32 %v249, 1.0
  %v253 = vadd.f32 %v251, 1.0
  %v254 = vrcp.pop %v252
  %v255 = vmul.f32 1.0, %v254
  %v256 = vrcp.pop %v253
  %v257 = vmul.f32 1.0, %v256
  %v258 = vmul.f32 %v240, %v255
  %v259 = vmul.f32 %v243, %v257
  %v260 = vpack.c.bf16 %v259, %v258
  %v261 = vld [vmem:[%s4] sm:$0xf]
  %v262 = vld [vmem:[%s4 + $0x4] sm:$0xf]
  %v263 = vld [vmem:[%s4 + $0x8] sm:$0xf]
  %v264 = vld [vmem:[%s4 + $0xc] sm:$0xf]
  %v265 = vld [vmem:[%s4 + $0x10] sm:$0xf]
  %v266 = vld [vmem:[%s4 + $0x14] sm:$0xf]
  %v267 = vld [vmem:[%s4 + $0x18] sm:$0xf]
  %v268 = vld [vmem:[%s4 + $0x1c] sm:$0xf]
  %v269 = vld [vmem:[%s4 + $0x20] sm:$0xf]
  %v270 = vld [vmem:[%s4 + $0x24] sm:$0xf]
  %v271 = vld [vmem:[%s4 + $0x28] sm:$0xf]
  %v272 = vld [vmem:[%s4 + $0x2c] sm:$0xf]
  %v273 = vld [vmem:[%s4 + $0x30] sm:$0xf]
  %v274 = vld [vmem:[%s4 + $0x34] sm:$0xf]
  %v275 = vld [vmem:[%s4 + $0x38] sm:$0xf]
  %v276 = vld [vmem:[%s4 + $0x3c] sm:$0xf]
  %v278 = vlaneseq
  %v279 = vshrl.u32 %v278, 7
  %v280 = vsub.s32 0, %v279
  %v281 = vrot.slane %v27, %v280
  %v299 = vunpack.c.l.b16 %v261
  %v300 = vunpack.c.l.b16 %v262
  %v301 = vunpack.c.l.b16 %v263
  %v302 = vunpack.c.l.b16 %v264
  %v303 = vunpack.c.l.b16 %v265
  %v304 = vunpack.c.l.b16 %v266
  %v305 = vunpack.c.l.b16 %v267
  %v306 = vunpack.c.l.b16 %v268
  %v307 = vunpack.c.l.b16 %v269
  %v308 = vunpack.c.l.b16 %v270
  %v309 = vunpack.c.l.b16 %v271
  %v310 = vunpack.c.l.b16 %v272
  %v311 = vunpack.c.l.b16 %v273
  %v312 = vunpack.c.l.b16 %v274
  %v313 = vunpack.c.l.b16 %v275
  %v314 = vunpack.c.l.b16 %v276
  %v315 = vpack.c.b16 %v300, %v299
  %v316 = vpack.c.b16 %v302, %v301
  %v317 = vpack.c.b16 %v304, %v303
  %v318 = vpack.c.b16 %v306, %v305
  %v319 = vpack.c.b16 %v308, %v307
  %v320 = vpack.c.b16 %v310, %v309
  %v321 = vpack.c.b16 %v312, %v311
  %v322 = vpack.c.b16 %v314, %v313
  %331 = vmatprep.subr.bf16.mxu0 0
  %332 = vmatpush1.bf16.msra.mxu0 %v315
  %333 = vmatprep.subr.bf16.mxu0 0
  %334 = vmatpush1.bf16.msra.mxu0 %v316
  %335 = vmatprep.subr.bf16.mxu0 0
  %336 = vmatpush1.bf16.msra.mxu0 %v317
  %337 = vmatprep.subr.bf16.mxu0 0
  %338 = vmatpush1.bf16.msra.mxu0 %v318
  %339 = vmatprep.subr.bf16.mxu0 0
  %340 = vmatpush1.bf16.msra.mxu0 %v319
  %341 = vmatprep.subr.bf16.mxu0 0
  %342 = vmatpush1.bf16.msra.mxu0 %v320
  %343 = vmatprep.subr.bf16.mxu0 0
  %344 = vmatpush1.bf16.msra.mxu0 %v321
  %345 = vmatprep.subr.bf16.mxu0 0
  %346 = vmatpush1.bf16.msra.mxu0 %v322
  %347 = vmatprep.subr.bf16.mxu0 0
  %348 = vmatpush1.bf16.msra.mxu0 0
  %349 = vmatprep.subr.bf16.mxu0 0
  %350 = vmatpush1.bf16.msra.mxu0 0
  %351 = vmatprep.subr.bf16.mxu0 0
  %352 = vmatpush1.bf16.msra.mxu0 0
  %353 = vmatprep.subr.bf16.mxu0 0
  %354 = vmatpush1.bf16.msra.mxu0 0
  %355 = vmatprep.subr.bf16.mxu0 0
  %356 = vmatpush1.bf16.msra.mxu0 0
  %357 = vmatprep.subr.bf16.mxu0 0
  %358 = vmatpush1.bf16.msra.mxu0 0
  %359 = vmatprep.subr.bf16.mxu0 0
  %360 = vmatpush1.bf16.msra.mxu0 0
  %361 = vmatprep.subr.bf16.mxu0 0
  %362 = vmatpush1.bf16.msra.mxu0 0
  %363 = vmatprep.mubr.bf16.mxu0 0
  %364 = vmatmul.mubr.bf16.gmra.mrb[0].mxu0 %v260
  %v365 = vpop.f32.mrb[0].mxu0
  %v366 = vadd.f32 %v281, %v365
  %v367 = vpop.f32.mrb[0].mxu0
  %v368 = vpop.f32.mrb[0].mxu0
  %v369 = vadd.f32 %v281, %v368
  %v370 = vpop.f32.mrb[0].mxu0
  %371 = vdwg.mxu0
  %v372 = vadd.f32 %v366, %v100
  %v373 = vadd.f32 %v369, %v103
  %374 = vst [vmem:[%s6] sm:$0xff] %v372
  %375 = vst [vmem:[%s6 + $0x8] sm:$0xff] %v373
  %v376 = vld [vmem:[%s0 + $0x10] sm:$0xff]
  %v377 = vld [vmem:[%s0 + $0x18] sm:$0xff]
  %v378 = vmul.f32 %v376, %v376
  %v379 = vmul.f32 %v377, %v377
  %v380 = vsel %vm32, %v378, 0.0
  %381 = vadd.xlane.f32.xlu0 %v380
  %v382 = vpop.xlane.xlu0 %381
  %v383 = vsel %vm32, %v379, 0.0
  %384 = vadd.xlane.f32.xlu0 %v383
  %v385 = vpop.xlane.xlu0 %384
  %v386 = vmax.f32 %v382, 1e-24
  %v387 = vmax.f32 %v385, 1e-24
  %v388 = vrsqrt.pop %v386
  %v389 = vrsqrt.pop %v387
  %v390 = vmul.f32 %v376, %v388
  %v391 = vmul.f32 %v377, %v389
  %v392 = vpack.c.bf16 %v391, %v390
  %v393 = vld [vmem:[%s1] sm:$0xf]
  %v394 = vld [vmem:[%s1 + $0x4] sm:$0xf]
  %v395 = vld [vmem:[%s1 + $0x8] sm:$0xf]
  %v396 = vld [vmem:[%s1 + $0xc] sm:$0xf]
  %v401 = vunpack.c.l.b16 %v393
  %v402 = vunpack.c.l.b16 %v394
  %v403 = vunpack.c.l.b16 %v395
  %v404 = vunpack.c.l.b16 %v396
  %v405 = vpack.c.b16 %v402, %v401
  %v406 = vpack.c.b16 %v404, %v403
  %v410 = vsel %vm32, %v392, 0
  %412 = vmatprep.subr.bf16.mxu0 0
  %413 = vmatpush1.bf16.msra.mxu0 %v405
  %414 = vmatprep.subr.bf16.mxu0 0
  %415 = vmatpush1.bf16.msra.mxu0 %v406
  %416 = vmatprep.subr.bf16.mxu0 0
  %417 = vmatpush1.bf16.msra.mxu0 0
  %418 = vmatprep.subr.bf16.mxu0 0
  %419 = vmatpush1.bf16.msra.mxu0 0
  %420 = vmatprep.subr.bf16.mxu0 0
  %421 = vmatpush1.bf16.msra.mxu0 0
  %422 = vmatprep.subr.bf16.mxu0 0
  %423 = vmatpush1.bf16.msra.mxu0 0
  %424 = vmatprep.subr.bf16.mxu0 0
  %425 = vmatpush1.bf16.msra.mxu0 0
  %426 = vmatprep.subr.bf16.mxu0 0
  %427 = vmatpush1.bf16.msra.mxu0 0
  %428 = vmatprep.subr.bf16.mxu0 0
  %429 = vmatpush1.bf16.msra.mxu0 0
  %430 = vmatprep.subr.bf16.mxu0 0
  %431 = vmatpush1.bf16.msra.mxu0 0
  %432 = vmatprep.subr.bf16.mxu0 0
  %433 = vmatpush1.bf16.msra.mxu0 0
  %434 = vmatprep.subr.bf16.mxu0 0
  %435 = vmatpush1.bf16.msra.mxu0 0
  %436 = vmatprep.subr.bf16.mxu0 0
  %437 = vmatpush1.bf16.msra.mxu0 0
  %438 = vmatprep.subr.bf16.mxu0 0
  %439 = vmatpush1.bf16.msra.mxu0 0
  %440 = vmatprep.subr.bf16.mxu0 0
  %441 = vmatpush1.bf16.msra.mxu0 0
  %442 = vmatprep.subr.bf16.mxu0 0
  %443 = vmatpush1.bf16.msra.mxu0 0
  %444 = vmatprep.mubr.bf16.mxu0 0
  %445 = vmatmul.mubr.bf16.gmra.mrb[0].mxu0 %v410
  %v446 = vpop.f32.mrb[0].mxu0
  %v447 = vadd.f32 0.0, %v446
  %v448 = vpop.f32.mrb[0].mxu0
  %v449 = vpop.f32.mrb[0].mxu0
  %v450 = vadd.f32 0.0, %v449
  %v451 = vpop.f32.mrb[0].mxu0
  %452 = vdwg.mxu0
  %453 = vst [vmem:[%s7 + $0x10] sm:$0xff] %v447
  %454 = vst [vmem:[%s7 + $0x18] sm:$0xff] %v450
  %455 = vadd.xlane.f32.xlu0 %v447
  %v456 = vpop.xlane.xlu0 %455
  %457 = vadd.xlane.f32.xlu0 %v450
  %v458 = vpop.xlane.xlu0 %457
  %v459 = vmul.f32 %v456, 0.0625
  %v460 = vmul.f32 %v458, 0.0625
  %v461 = vmul.f32 %v447, %v447
  %v462 = vmul.f32 %v450, %v450
  %463 = vadd.xlane.f32.xlu0 %v461
  %v464 = vpop.xlane.xlu0 %463
  %465 = vadd.xlane.f32.xlu0 %v462
  %v466 = vpop.xlane.xlu0 %465
  %v467 = vmul.f32 %v464, 0.0625
  %v468 = vmul.f32 %v466, 0.0625
  %v469 = vmul.f32 %v459, %v459
  %v470 = vmul.f32 %v460, %v460
  %v471 = vsub.f32 %v467, %v469
  %v472 = vsub.f32 %v468, %v470
  %v473 = vsub.f32 %v447, %v459
  %v474 = vsub.f32 %v450, %v460
  %v475 = vadd.f32 %v471, 1e-05
  %v476 = vadd.f32 %v472, 1e-05
  %v477 = vrsqrt.pop %v475
  %v478 = vrsqrt.pop %v476
  %v479 = vmul.f32 %v473, %v477
  %v480 = vmul.f32 %v474, %v478
  %v481 = vpack.c.bf16 %v480, %v479
  %v482 = vld [vmem:[%s2] sm:$0xf]
  %v483 = vld [vmem:[%s2 + $0x4] sm:$0xf]
  %v484 = vld [vmem:[%s2 + $0x8] sm:$0xf]
  %v485 = vld [vmem:[%s2 + $0xc] sm:$0xf]
  %v486 = vld [vmem:[%s2 + $0x10] sm:$0xf]
  %v487 = vld [vmem:[%s2 + $0x14] sm:$0xf]
  %v488 = vld [vmem:[%s2 + $0x18] sm:$0xf]
  %v489 = vld [vmem:[%s2 + $0x1c] sm:$0xf]
  %v490 = vld [vmem:[%s2 + $0x20] sm:$0xf]
  %v491 = vld [vmem:[%s2 + $0x24] sm:$0xf]
  %v492 = vld [vmem:[%s2 + $0x28] sm:$0xf]
  %v493 = vld [vmem:[%s2 + $0x2c] sm:$0xf]
  %v494 = vld [vmem:[%s2 + $0x30] sm:$0xf]
  %v495 = vld [vmem:[%s2 + $0x34] sm:$0xf]
  %v496 = vld [vmem:[%s2 + $0x38] sm:$0xf]
  %v497 = vld [vmem:[%s2 + $0x3c] sm:$0xf]
  %v514 = vunpack.c.l.b16 %v482
  %v515 = vunpack.c.l.b16 %v483
  %v516 = vunpack.c.l.b16 %v484
  %v517 = vunpack.c.l.b16 %v485
  %v518 = vunpack.c.l.b16 %v486
  %v519 = vunpack.c.l.b16 %v487
  %v520 = vunpack.c.l.b16 %v488
  %v521 = vunpack.c.l.b16 %v489
  %v522 = vunpack.c.l.b16 %v490
  %v523 = vunpack.c.l.b16 %v491
  %v524 = vunpack.c.l.b16 %v492
  %v525 = vunpack.c.l.b16 %v493
  %v526 = vunpack.c.l.b16 %v494
  %v527 = vunpack.c.l.b16 %v495
  %v528 = vunpack.c.l.b16 %v496
  %v529 = vunpack.c.l.b16 %v497
  %v530 = vpack.c.b16 %v515, %v514
  %v531 = vpack.c.b16 %v517, %v516
  %v532 = vpack.c.b16 %v519, %v518
  %v533 = vpack.c.b16 %v521, %v520
  %v534 = vpack.c.b16 %v523, %v522
  %v535 = vpack.c.b16 %v525, %v524
  %v536 = vpack.c.b16 %v527, %v526
  %v537 = vpack.c.b16 %v529, %v528
  %546 = vmatprep.subr.bf16.mxu0 0
  %547 = vmatpush1.bf16.msra.mxu0 %v530
  %548 = vmatprep.subr.bf16.mxu0 0
  %549 = vmatpush1.bf16.msra.mxu0 %v531
  %550 = vmatprep.subr.bf16.mxu0 0
  %551 = vmatpush1.bf16.msra.mxu0 %v532
  %552 = vmatprep.subr.bf16.mxu0 0
  %553 = vmatpush1.bf16.msra.mxu0 %v533
  %554 = vmatprep.subr.bf16.mxu0 0
  %555 = vmatpush1.bf16.msra.mxu0 %v534
  %556 = vmatprep.subr.bf16.mxu0 0
  %557 = vmatpush1.bf16.msra.mxu0 %v535
  %558 = vmatprep.subr.bf16.mxu0 0
  %559 = vmatpush1.bf16.msra.mxu0 %v536
  %560 = vmatprep.subr.bf16.mxu0 0
  %561 = vmatpush1.bf16.msra.mxu0 %v537
  %562 = vmatprep.subr.bf16.mxu0 0
  %563 = vmatpush1.bf16.msra.mxu0 0
  %564 = vmatprep.subr.bf16.mxu0 0
  %565 = vmatpush1.bf16.msra.mxu0 0
  %566 = vmatprep.subr.bf16.mxu0 0
  %567 = vmatpush1.bf16.msra.mxu0 0
  %568 = vmatprep.subr.bf16.mxu0 0
  %569 = vmatpush1.bf16.msra.mxu0 0
  %570 = vmatprep.subr.bf16.mxu0 0
  %571 = vmatpush1.bf16.msra.mxu0 0
  %572 = vmatprep.subr.bf16.mxu0 0
  %573 = vmatpush1.bf16.msra.mxu0 0
  %574 = vmatprep.subr.bf16.mxu0 0
  %575 = vmatpush1.bf16.msra.mxu0 0
  %576 = vmatprep.subr.bf16.mxu0 0
  %577 = vmatpush1.bf16.msra.mxu0 0
  %578 = vmatprep.mubr.bf16.mxu0 0
  %579 = vmatmul.mubr.bf16.gmra.mrb[0].mxu0 %v481
  %v580 = vpop.f32.mrb[0].mxu0
  %v581 = vadd.f32 %v155, %v580
  %v582 = vpop.f32.mrb[0].mxu0
  %v583 = vpop.f32.mrb[0].mxu0
  %v584 = vadd.f32 %v155, %v583
  %v585 = vpop.f32.mrb[0].mxu0
  %586 = vdwg.mxu0
  %v587 = vxor.u32 %v581, 2147483648
  %v588 = vxor.u32 %v584, 2147483648
  %v589 = vmul.f32 %v587, 1.442695
  %v590 = vpow.pop %v589
  %v591 = vmul.f32 %v588, 1.442695
  %v592 = vpow.pop %v591
  %v593 = vadd.f32 %v590, 1.0
  %v594 = vadd.f32 %v592, 1.0
  %v595 = vrcp.pop %v593
  %v596 = vmul.f32 1.0, %v595
  %v597 = vrcp.pop %v594
  %v598 = vmul.f32 1.0, %v597
  %v599 = vmul.f32 %v581, %v596
  %v600 = vmul.f32 %v584, %v598
  %v601 = vpack.c.bf16 %v600, %v599
  %v602 = vld [vmem:[%s4] sm:$0xf]
  %v603 = vld [vmem:[%s4 + $0x4] sm:$0xf]
  %v604 = vld [vmem:[%s4 + $0x8] sm:$0xf]
  %v605 = vld [vmem:[%s4 + $0xc] sm:$0xf]
  %v606 = vld [vmem:[%s4 + $0x10] sm:$0xf]
  %v607 = vld [vmem:[%s4 + $0x14] sm:$0xf]
  %v608 = vld [vmem:[%s4 + $0x18] sm:$0xf]
  %v609 = vld [vmem:[%s4 + $0x1c] sm:$0xf]
  %v610 = vld [vmem:[%s4 + $0x20] sm:$0xf]
  %v611 = vld [vmem:[%s4 + $0x24] sm:$0xf]
  %v612 = vld [vmem:[%s4 + $0x28] sm:$0xf]
  %v613 = vld [vmem:[%s4 + $0x2c] sm:$0xf]
  %v614 = vld [vmem:[%s4 + $0x30] sm:$0xf]
  %v615 = vld [vmem:[%s4 + $0x34] sm:$0xf]
  %v616 = vld [vmem:[%s4 + $0x38] sm:$0xf]
  %v617 = vld [vmem:[%s4 + $0x3c] sm:$0xf]
  %v634 = vunpack.c.l.b16 %v602
  %v635 = vunpack.c.l.b16 %v603
  %v636 = vunpack.c.l.b16 %v604
  %v637 = vunpack.c.l.b16 %v605
  %v638 = vunpack.c.l.b16 %v606
  %v639 = vunpack.c.l.b16 %v607
  %v640 = vunpack.c.l.b16 %v608
  %v641 = vunpack.c.l.b16 %v609
  %v642 = vunpack.c.l.b16 %v610
  %v643 = vunpack.c.l.b16 %v611
  %v644 = vunpack.c.l.b16 %v612
  %v645 = vunpack.c.l.b16 %v613
  %v646 = vunpack.c.l.b16 %v614
  %v647 = vunpack.c.l.b16 %v615
  %v648 = vunpack.c.l.b16 %v616
  %v649 = vunpack.c.l.b16 %v617
  %v650 = vpack.c.b16 %v635, %v634
  %v651 = vpack.c.b16 %v637, %v636
  %v652 = vpack.c.b16 %v639, %v638
  %v653 = vpack.c.b16 %v641, %v640
  %v654 = vpack.c.b16 %v643, %v642
  %v655 = vpack.c.b16 %v645, %v644
  %v656 = vpack.c.b16 %v647, %v646
  %v657 = vpack.c.b16 %v649, %v648
  %666 = vmatprep.subr.bf16.mxu0 0
  %667 = vmatpush1.bf16.msra.mxu0 %v650
  %668 = vmatprep.subr.bf16.mxu0 0
  %669 = vmatpush1.bf16.msra.mxu0 %v651
  %670 = vmatprep.subr.bf16.mxu0 0
  %671 = vmatpush1.bf16.msra.mxu0 %v652
  %672 = vmatprep.subr.bf16.mxu0 0
  %673 = vmatpush1.bf16.msra.mxu0 %v653
  %674 = vmatprep.subr.bf16.mxu0 0
  %675 = vmatpush1.bf16.msra.mxu0 %v654
  %676 = vmatprep.subr.bf16.mxu0 0
  %677 = vmatpush1.bf16.msra.mxu0 %v655
  %678 = vmatprep.subr.bf16.mxu0 0
  %679 = vmatpush1.bf16.msra.mxu0 %v656
  %680 = vmatprep.subr.bf16.mxu0 0
  %681 = vmatpush1.bf16.msra.mxu0 %v657
  %682 = vmatprep.subr.bf16.mxu0 0
  %683 = vmatpush1.bf16.msra.mxu0 0
  %684 = vmatprep.subr.bf16.mxu0 0
  %685 = vmatpush1.bf16.msra.mxu0 0
  %686 = vmatprep.subr.bf16.mxu0 0
  %687 = vmatpush1.bf16.msra.mxu0 0
  %688 = vmatprep.subr.bf16.mxu0 0
  %689 = vmatpush1.bf16.msra.mxu0 0
  %690 = vmatprep.subr.bf16.mxu0 0
  %691 = vmatpush1.bf16.msra.mxu0 0
  %692 = vmatprep.subr.bf16.mxu0 0
  %693 = vmatpush1.bf16.msra.mxu0 0
  %694 = vmatprep.subr.bf16.mxu0 0
  %695 = vmatpush1.bf16.msra.mxu0 0
  %696 = vmatprep.subr.bf16.mxu0 0
  %697 = vmatpush1.bf16.msra.mxu0 0
  %698 = vmatprep.mubr.bf16.mxu0 0
  %699 = vmatmul.mubr.bf16.gmra.mrb[0].mxu0 %v601
  %v700 = vpop.f32.mrb[0].mxu0
  %v701 = vadd.f32 %v281, %v700
  %v702 = vpop.f32.mrb[0].mxu0
  %v703 = vpop.f32.mrb[0].mxu0
  %v704 = vadd.f32 %v281, %v703
  %v705 = vpop.f32.mrb[0].mxu0
  %706 = vdwg.mxu0
  %v707 = vadd.f32 %v701, %v447
  %v708 = vadd.f32 %v704, %v450
  %709 = vst [vmem:[%s6 + $0x10] sm:$0xff] %v707
  %710 = vst [vmem:[%s6 + $0x18] sm:$0xff] %v708
  // Predicated region
  $region26: #{relative_transformer_block.1} parent=0 // pred_check
    _
  $region27: #{relative_transformer_block.1} parent=0 // pred_check_branch
    %712 = sbr.rel (0) target = $region29
  $region28: #{relative_transformer_block.1} parent=0 // pred_region
    _
  $region29: #{relative_transformer_block.1} parent=0 // pred_fallthru
    _
  // Predicated region
  $region30: #{relative_transformer_block.1} parent=0 // pred_check
    _
  $region31: #{relative_transformer_block.1} parent=0 // pred_check_branch
    %714 = sbr.rel (0) target = $region33
  $region32: #{relative_transformer_block.1} parent=0 // pred_region
    _
  $region33: #{relative_transformer_block.1} parent=0 // pred_fallthru
    _
  // Predicated region
  $region34: #{relative_transformer_block.1} parent=0 // pred_check
    _
  $region35: #{relative_transformer_block.1} parent=0 // pred_check_branch
    %716 = sbr.rel (0) target = $region37
  $region36: #{relative_transformer_block.1} parent=0 // pred_region
    _
  $region37: #{relative_transformer_block.1} parent=0 // pred_fallthru
    _
  // Predicated region
  $region38: #{relative_transformer_block.1} parent=0 // pred_check
    _
  $region39: #{relative_transformer_block.1} parent=0 // pred_check_branch
    %718 = sbr.rel (0) target = $region41
  $region40: #{relative_transformer_block.1} parent=0 // pred_region
    _
  $region41: #{relative_transformer_block.1} parent=0 // pred_fallthru
    _

</llo_original>
